<compile_context>
chip_gen: v7x
topology: tpu7x:2x2x1
jax: 0.10.0
libtpu: 0.0.40
codegen_flags: <defaults>
</compile_context>

<pallas_src>
import math
import functools

import jax
import jax.numpy as jnp
from jax.experimental import pallas as pl
from jax.experimental.pallas import tpu as pltpu


def _round_up(x: int, m: int) -> int:
    return ((x + m - 1) // m) * m


def _gelu_tanh(x):
    # Exact expression from the PyTorch GeLU module.
    return 0.5 * x * (1.0 + jnp.tanh(x * 0.7978845608 * (1.0 + 0.044715 * x * x)))


# ---------------------------------------------------------------------------
# Kernel
# ---------------------------------------------------------------------------
def prediction_kernel(a_ref, b_ref, w1_ref, b1_ref, w2_ref, b2_ref, o_ref):
    # a_ref/b_ref: (TB, H); w1_ref: (4H, H); b1_ref: (1, H);
    # w2_ref: (H, C_pad); b2_ref: (1, C_pad); o_ref: (TB, C_pad)
    wdt = w1_ref.dtype
    a = a_ref[...]
    b = b_ref[...]
    H = a.shape[-1]

    # concat([a, b, a-b, a*b]) @ W1  ==  sum of 4 matmuls on static row-slices
    # of the W1 Ref (slices taken on the Ref -> no full-weight materialization).
    def k_dot(x, k):
        return jnp.dot(x.astype(wdt), w1_ref[pl.ds(k * H, H), :],
                       preferred_element_type=jnp.float32)

    h = k_dot(a, 0) + k_dot(b, 1) + k_dot(a - b, 2) + k_dot(a * b, 3)
    h = h + b1_ref[...]            # bias1 (1, H) broadcasts over the batch tile
    h = _gelu_tanh(h)              # tanh lands on the EUP slot (free under MXU-bound)

    out = jnp.dot(h.astype(w2_ref.dtype), w2_ref[...],
                  preferred_element_type=jnp.float32) + b2_ref[...]
    o_ref[...] = out.astype(o_ref.dtype)


# ---------------------------------------------------------------------------
# Wrapper
# ---------------------------------------------------------------------------
_VMEM_LIMIT_BYTES = 48 * 1024 * 1024   # headroom under v7x's 64 MiB physical VMEM
_TILE_BUDGET_BYTES = 40 * 1024 * 1024


def _choose_block_b(B, H_pad, C_pad, w_itemsize):
    """Largest batch tile (multiple of 8, <=512) s.t. resident weights plus
    double-buffered streaming blocks fit the VMEM budget."""
    resident = (4 * H_pad * H_pad + H_pad * C_pad) * w_itemsize + (H_pad + C_pad) * 4
    # per batch-row: 2x-buffered a,b inputs + output, plus rough f32 temporaries.
    per_row = 2 * (2 * H_pad * 4 + C_pad * 4) + 6 * H_pad * 4
    avail = max(_TILE_BUDGET_BYTES - resident, 2 * 1024 * 1024)
    tb = int(avail // per_row)
    tb = max(8, min(512, (tb // 8) * 8))
    tb = min(tb, max(8, _round_up(B, 8)))
    return tb


@jax.jit
def prediction_forward(a, b, w1, b1, w2, b2):
    """a, b: (B, H); w1: (4H, H); b1: (1, H); w2: (H, C); b2: (1, C) -> (B, C)."""
    B, H = a.shape
    C = w2.shape[1]
    assert w1.shape == (4 * H, H) and b1.shape == (1, H)
    assert w2.shape[0] == H and b2.shape == (1, C)

    # --- padding for TPU-friendly layout (all static Python-int math) --------
    H_pad = _round_up(H, 8)          # W1 row-slices must be sublane-aligned
    C_pad = _round_up(C, 128)        # lane-dense output store

    if H_pad != H:
        w1b = w1.reshape(4, H, H)
        w1b = jnp.pad(w1b, ((0, 0), (0, H_pad - H), (0, H_pad - H)))
        w1 = w1b.reshape(4 * H_pad, H_pad)
        b1 = jnp.pad(b1, ((0, 0), (0, H_pad - H)))
        w2 = jnp.pad(w2, ((0, H_pad - H), (0, 0)))
    if C_pad != C:
        w2 = jnp.pad(w2, ((0, 0), (0, C_pad - C)))   # padded columns stay exactly 0
        b2 = jnp.pad(b2, ((0, 0), (0, C_pad - C)))

    block_b = _choose_block_b(B, H_pad, C_pad, jnp.dtype(w1.dtype).itemsize)
    B_pad = _round_up(B, block_b)

    pad_rows, pad_cols = B_pad - B, H_pad - H
    if pad_rows or pad_cols:
        a = jnp.pad(a, ((0, pad_rows), (0, pad_cols)))
        b = jnp.pad(b, ((0, pad_rows), (0, pad_cols)))

    grid = (B_pad // block_b,)

    out = pl.pallas_call(
        prediction_kernel,
        out_shape=jax.ShapeDtypeStruct((B_pad, C_pad), jnp.float32),
        grid=grid,
        in_specs=[
            pl.BlockSpec((block_b, H_pad), lambda i: (i, 0)),     # a  (streamed)
            pl.BlockSpec((block_b, H_pad), lambda i: (i, 0)),     # b  (streamed)
            pl.BlockSpec((4 * H_pad, H_pad), lambda i: (0, 0)),   # W1 (resident)
            pl.BlockSpec((1, H_pad), lambda i: (0, 0)),           # b1 (resident)
            pl.BlockSpec((H_pad, C_pad), lambda i: (0, 0)),       # W2 (resident)
            pl.BlockSpec((1, C_pad), lambda i: (0, 0)),           # b2 (resident)
        ],
        out_specs=pl.BlockSpec((block_b, C_pad), lambda i: (i, 0)),
        compiler_params=pltpu.CompilerParams(
            dimension_semantics=("parallel",),
            vmem_limit_bytes=_VMEM_LIMIT_BYTES,
        ),
    )(a, b, w1, b1, w2, b2)

    return out[:B, :C]


# ---------------------------------------------------------------------------
# Parameter init (mirrors the PyTorch module: weight_norm(dim=0) at init -> w == v)
# ---------------------------------------------------------------------------
def _weight_norm(v):
    g = jnp.sqrt(jnp.sum(v * v, axis=1, keepdims=True))          # (out, 1)
    w = g * v / jnp.maximum(jnp.sqrt(jnp.sum(v * v, axis=1, keepdims=True)), 1e-12)
    return w


def init_prediction_params(key, hidden_size, num_classes):
    k1, k2 = jax.random.split(key)
    in1 = hidden_size * 4
    # Linear(4H -> H, activations=True): std = sqrt(2 / in_features), bias = 0
    v1 = jax.random.normal(k1, (hidden_size, in1), jnp.float32) * math.sqrt(2.0 / in1)
    w1 = _weight_norm(v1).T                                      # (4H, H)
    b1 = jnp.zeros((1, hidden_size), jnp.float32)
    # Linear(H -> num_classes, activations=False): std = sqrt(1 / in_features), bias = 0
    v2 = jax.random.normal(k2, (num_classes, hidden_size), jnp.float32) * math.sqrt(1.0 / hidden_size)
    w2 = _weight_norm(v2).T                                      # (H, C)
    b2 = jnp.zeros((1, num_classes), jnp.float32)
    return w1, b1, w2, b2


def _reference(a, b, w1, b1, w2, b2):
    # Mirrors the kernel's dtype handling: dot inputs cast to the weight dtype,
    # accumulation in f32. For f32 weights this is exactly the module's forward.
    x = jnp.concatenate([a, b, a - b, a * b], axis=-1).astype(w1.dtype)
    h = jnp.dot(x, w1, preferred_element_type=jnp.float32) + b1
    h = _gelu_tanh(h)
    return jnp.dot(h.astype(w2.dtype), w2, preferred_element_type=jnp.float32) + b2


if __name__ == "__main__":
    batch, hidden, num_classes = 8, 32, 4

    key = jax.random.PRNGKey(0)
    ka, kb, kp = jax.random.split(key, 3)
    a = jax.random.normal(ka, (batch, hidden), jnp.float32)
    b = jax.random.normal(kb, (batch, hidden), jnp.float32)
    w1, b1, w2, b2 = init_prediction_params(kp, hidden, num_classes)

    # f32 path: exact module semantics.
    out = jax.block_until_ready(prediction_forward(a, b, w1, b1, w2, b2))
    ref = _reference(a, b, w1, b1, w2, b2)
    assert out.shape == (batch, num_classes)
    assert jnp.allclose(out, ref, atol=1e-5, rtol=1e-5), "f32 mismatch vs reference"

    # bf16-weight fast path (MXU-native rate, f32 accumulation).
    w1_bf, w2_bf = w1.astype(jnp.bfloat16), w2.astype(jnp.bfloat16)
    out_bf = jax.block_until_ready(prediction_forward(a, b, w1_bf, b1, w2_bf, b2))
    ref_bf = _reference(a, b, w1_bf, b1, w2_bf, b2)
    assert out_bf.shape == (batch, num_classes)
    assert jnp.allclose(out_bf, ref_bf, atol=5e-3, rtol=5e-3), "bf16 mismatch vs reference"

    print("KERNEL_OK")
</pallas_src>

<mosaic_0001>
module attributes {stable_mosaic.version = 11 : i64} {
  func.func @prediction_kernel(%arg0: i32, %arg1: memref<8x32xf32, #tpu.memory_space<vmem>>, %arg2: memref<8x32xf32, #tpu.memory_space<vmem>>, %arg3: memref<128x32xf32, #tpu.memory_space<vmem>>, %arg4: memref<1x32xf32, #tpu.memory_space<vmem>>, %arg5: memref<32x128xf32, #tpu.memory_space<vmem>>, %arg6: memref<1x128xf32, #tpu.memory_space<vmem>>, %arg7: memref<8x128xf32, #tpu.memory_space<vmem>>) attributes {dimension_semantics = [#tpu.dimension_semantics<parallel>], iteration_bounds = array<i64: 1>, scalar_prefetch = 0 : i64, scratch_operands = 0 : i64, tpu.core_type = #tpu.core_type<tc>, window_params = [{transform_indices = @transform_0, window_bounds = array<i64: 8, 32>}, {transform_indices = @transform_1, window_bounds = array<i64: 8, 32>}, {pipeline_mode = #tpu.pipeline_mode<synchronous>, transform_indices = @transform_2, window_bounds = array<i64: 128, 32>}, {pipeline_mode = #tpu.pipeline_mode<synchronous>, transform_indices = @transform_3, window_bounds = array<i64: 1, 32>}, {pipeline_mode = #tpu.pipeline_mode<synchronous>, transform_indices = @transform_4, window_bounds = array<i64: 32, 128>}, {pipeline_mode = #tpu.pipeline_mode<synchronous>, transform_indices = @transform_5, window_bounds = array<i64: 1, 128>}, {transform_indices = @transform_6, window_bounds = array<i64: 8, 128>}]} {
    %c0 = arith.constant 0 : index
    %c0_0 = arith.constant 0 : index
    %0 = vector.load %arg1[%c0, %c0_0] : memref<8x32xf32, #tpu.memory_space<vmem>>, vector<8x32xf32>
    %c0_1 = arith.constant 0 : index
    %c0_2 = arith.constant 0 : index
    %1 = vector.load %arg2[%c0_1, %c0_2] : memref<8x32xf32, #tpu.memory_space<vmem>>, vector<8x32xf32>
    %c0_3 = arith.constant 0 : index
    %c0_4 = arith.constant 0 : index
    %2 = vector.load %arg3[%c0_3, %c0_4] : memref<128x32xf32, #tpu.memory_space<vmem>>, vector<32x32xf32>
    %cst = arith.constant dense<0.000000e+00> : vector<8x32xf32>
    %3 = tpu.matmul %0, %2, %cst {dimension_numbers = #tpu.dot_dimension_numbers<[1], [0], [0], [1], [0, 0, 1, 1], [], []>} : vector<8x32xf32>, vector<32x32xf32>, vector<8x32xf32> -> vector<8x32xf32>
    %c32 = arith.constant 32 : index
    %c0_5 = arith.constant 0 : index
    %4 = vector.load %arg3[%c32, %c0_5] : memref<128x32xf32, #tpu.memory_space<vmem>>, vector<32x32xf32>
    %cst_6 = arith.constant dense<0.000000e+00> : vector<8x32xf32>
    %5 = tpu.matmul %1, %4, %cst_6 {dimension_numbers = #tpu.dot_dimension_numbers<[1], [0], [0], [1], [0, 0, 1, 1], [], []>} : vector<8x32xf32>, vector<32x32xf32>, vector<8x32xf32> -> vector<8x32xf32>
    %6 = arith.addf %3, %5 : vector<8x32xf32>
    %7 = arith.subf %0, %1 : vector<8x32xf32>
    %c64 = arith.constant 64 : index
    %c0_7 = arith.constant 0 : index
    %8 = vector.load %arg3[%c64, %c0_7] : memref<128x32xf32, #tpu.memory_space<vmem>>, vector<32x32xf32>
    %cst_8 = arith.constant dense<0.000000e+00> : vector<8x32xf32>
    %9 = tpu.matmul %7, %8, %cst_8 {dimension_numbers = #tpu.dot_dimension_numbers<[1], [0], [0], [1], [0, 0, 1, 1], [], []>} : vector<8x32xf32>, vector<32x32xf32>, vector<8x32xf32> -> vector<8x32xf32>
    %10 = arith.addf %6, %9 : vector<8x32xf32>
    %11 = arith.mulf %0, %1 : vector<8x32xf32>
    %c96 = arith.constant 96 : index
    %c0_9 = arith.constant 0 : index
    %12 = vector.load %arg3[%c96, %c0_9] : memref<128x32xf32, #tpu.memory_space<vmem>>, vector<32x32xf32>
    %cst_10 = arith.constant dense<0.000000e+00> : vector<8x32xf32>
    %13 = tpu.matmul %11, %12, %cst_10 {dimension_numbers = #tpu.dot_dimension_numbers<[1], [0], [0], [1], [0, 0, 1, 1], [], []>} : vector<8x32xf32>, vector<32x32xf32>, vector<8x32xf32> -> vector<8x32xf32>
    %14 = arith.addf %10, %13 : vector<8x32xf32>
    %c0_11 = arith.constant 0 : index
    %c0_12 = arith.constant 0 : index
    %15 = vector.load %arg4[%c0_11, %c0_12] : memref<1x32xf32, #tpu.memory_space<vmem>>, vector<1x32xf32>
    %16 = vector.broadcast %15 : vector<1x32xf32> to vector<8x32xf32>
    %17 = arith.addf %14, %16 : vector<8x32xf32>
    %cst_13 = arith.constant 5.000000e-01 : f32
    %18 = vector.broadcast %cst_13 : f32 to vector<8x32xf32>
    %19 = arith.mulf %18, %17 : vector<8x32xf32>
    %cst_14 = arith.constant 0.797884583 : f32
    %20 = vector.broadcast %cst_14 : f32 to vector<8x32xf32>
    %21 = arith.mulf %17, %20 : vector<8x32xf32>
    %cst_15 = arith.constant 4.471500e-02 : f32
    %22 = vector.broadcast %cst_15 : f32 to vector<8x32xf32>
    %23 = arith.mulf %22, %17 : vector<8x32xf32>
    %24 = arith.mulf %23, %17 : vector<8x32xf32>
    %cst_16 = arith.constant 1.000000e+00 : f32
    %25 = vector.broadcast %cst_16 : f32 to vector<8x32xf32>
    %26 = arith.addf %25, %24 : vector<8x32xf32>
    %27 = arith.mulf %21, %26 : vector<8x32xf32>
    %28 = math.tanh %27 : vector<8x32xf32>
    %cst_17 = arith.constant 1.000000e+00 : f32
    %29 = vector.broadcast %cst_17 : f32 to vector<8x32xf32>
    %30 = arith.addf %29, %28 : vector<8x32xf32>
    %31 = arith.mulf %19, %30 : vector<8x32xf32>
    %c0_18 = arith.constant 0 : index
    %c0_19 = arith.constant 0 : index
    %32 = vector.load %arg5[%c0_18, %c0_19] : memref<32x128xf32, #tpu.memory_space<vmem>>, vector<32x128xf32>
    %cst_20 = arith.constant dense<0.000000e+00> : vector<8x128xf32>
    %33 = tpu.matmul %31, %32, %cst_20 {dimension_numbers = #tpu.dot_dimension_numbers<[1], [0], [0], [1], [0, 0, 1, 1], [], []>} : vector<8x32xf32>, vector<32x128xf32>, vector<8x128xf32> -> vector<8x128xf32>
    %c0_21 = arith.constant 0 : index
    %c0_22 = arith.constant 0 : index
    %34 = vector.load %arg6[%c0_21, %c0_22] : memref<1x128xf32, #tpu.memory_space<vmem>>, vector<1x128xf32>
    %35 = vector.broadcast %34 : vector<1x128xf32> to vector<8x128xf32>
    %36 = arith.addf %33, %35 : vector<8x128xf32>
    %c0_23 = arith.constant 0 : index
    %c0_24 = arith.constant 0 : index
    %37 = vector.load %arg7[%c0_23, %c0_24] : memref<8x128xf32, #tpu.memory_space<vmem>>, vector<8x128xf32>
    tpu.vector_store %arg7[%c0_23, %c0_24], %36 {strides = array<i32>} : memref<8x128xf32, #tpu.memory_space<vmem>>, vector<8x128xf32>,
    return
  }
  func.func @transform_0(%arg0: i32) -> (i32, i32) {
    %c0_i32 = arith.constant 0 : i32
    %c0_i32_0 = arith.constant 0 : i32
    return %arg0, %c0_i32 : i32, i32
  }
  func.func @transform_1(%arg0: i32) -> (i32, i32) {
    %c0_i32 = arith.constant 0 : i32
    %c0_i32_0 = arith.constant 0 : i32
    return %arg0, %c0_i32 : i32, i32
  }
  func.func @transform_2(%arg0: i32) -> (i32, i32) {
    %c0_i32 = arith.constant 0 : i32
    %c0_i32_0 = arith.constant 0 : i32
    %c0_i32_1 = arith.constant 0 : i32
    return %c0_i32, %c0_i32_0 : i32, i32
  }
  func.func @transform_3(%arg0: i32) -> (i32, i32) {
    %c0_i32 = arith.constant 0 : i32
    %c0_i32_0 = arith.constant 0 : i32
    %c0_i32_1 = arith.constant 0 : i32
    return %c0_i32, %c0_i32_0 : i32, i32
  }
  func.func @transform_4(%arg0: i32) -> (i32, i32) {
    %c0_i32 = arith.constant 0 : i32
    %c0_i32_0 = arith.constant 0 : i32
    %c0_i32_1 = arith.constant 0 : i32
    return %c0_i32, %c0_i32_0 : i32, i32
  }
  func.func @transform_5(%arg0: i32) -> (i32, i32) {
    %c0_i32 = arith.constant 0 : i32
    %c0_i32_0 = arith.constant 0 : i32
    %c0_i32_1 = arith.constant 0 : i32
    return %c0_i32, %c0_i32_0 : i32, i32
  }
  func.func @transform_6(%arg0: i32) -> (i32, i32) {
    %c0_i32 = arith.constant 0 : i32
    %c0_i32_0 = arith.constant 0 : i32
    return %arg0, %c0_i32 : i32, i32
  }
}

</mosaic_0001>

<llo_original>
// kernel: prediction_forward.1
$region0: #{prediction_forward.1}
  #allocation0 [shape = 'u32[]', space=smem, size = 0x4, offset = 0x4, fixed_abs, tag = 'smem constant byte address 0x4 - core index']
  #allocation1 [shape = 'u32[144,128]{1,0:T(1,128)}', space=vmem, size = 0x12000, scoped, tag = 'internal scratch']
  %s0 = inlined_call_operand.vmem [shape: f32[8,32], index: 0, kind: input, shape index: {}]
  %s1 = inlined_call_operand.vmem [shape: f32[8,32], index: 1, kind: input, shape index: {}]
  %s2 = inlined_call_operand.vmem [shape: f32[128,32], index: 2, kind: input, shape index: {}]
  %s3 = inlined_call_operand.vmem [shape: f32[1,32], index: 3, kind: input, shape index: {}]
  %s4 = inlined_call_operand.vmem [shape: f32[32,128], index: 4, kind: input, shape index: {}]
  %s5 = inlined_call_operand.vmem [shape: f32[1,128], index: 5, kind: input, shape index: {}]
  %s6 = inlined_call_operand.vmem [shape: f32[8,128], index: 6, kind: output, shape index: {}]
  %s7 = sld [smem:[#allocation0]]
  $region34: #{prediction_forward.1} parent=0
    _
  %s9 = ssub.s32 1, %s7
  %s10 = scalar_select 0, %s9, %s7
  // Predicated region
  $region2: #{prediction_forward.1} parent=0 // pred_check
    _
  $region3: #{prediction_forward.1} parent=0 // pred_check_branch
    %12 = sbr.rel (0) target = $region5
  $region4: #{prediction_forward.1} parent=0 // pred_region
    _
  $region5: #{prediction_forward.1} parent=0 // pred_fallthru
    _
  // Predicated region
  $region6: #{prediction_forward.1} parent=0 // pred_check
    _
  $region7: #{prediction_forward.1} parent=0 // pred_check_branch
    %14 = sbr.rel (0) target = $region9
  $region8: #{prediction_forward.1} parent=0 // pred_region
    _
  $region9: #{prediction_forward.1} parent=0 // pred_fallthru
    _
  // Predicated region
  $region10: #{prediction_forward.1} parent=0 // pred_check
    _
  $region11: #{prediction_forward.1} parent=0 // pred_check_branch
    %16 = sbr.rel (0) target = $region13
  $region12: #{prediction_forward.1} parent=0 // pred_region
    _
  $region13: #{prediction_forward.1} parent=0 // pred_fallthru
    _
  // Predicated region
  $region14: #{prediction_forward.1} parent=0 // pred_check
    _
  $region15: #{prediction_forward.1} parent=0 // pred_check_branch
    %18 = sbr.rel (0) target = $region17
  $region16: #{prediction_forward.1} parent=0 // pred_region
    _
  $region17: #{prediction_forward.1} parent=0 // pred_fallthru
    _
  // Predicated region
  $region18: #{prediction_forward.1} parent=0 // pred_check
    _
  $region19: #{prediction_forward.1} parent=0 // pred_check_branch
    %20 = sbr.rel (0) target = $region21
  $region20: #{prediction_forward.1} parent=0 // pred_region
    _
  $region21: #{prediction_forward.1} parent=0 // pred_fallthru
    _
  // Predicated region
  $region22: #{prediction_forward.1} parent=0 // pred_check
    _
  $region23: #{prediction_forward.1} parent=0 // pred_check_branch
    %22 = sbr.rel (0) target = $region25
  $region24: #{prediction_forward.1} parent=0 // pred_region
    _
  $region25: #{prediction_forward.1} parent=0 // pred_fallthru
    _
  %v23 = vld [vmem:[%s0] sm:$0xff]
  %v24 = vld [vmem:[%s1] sm:$0xff]
  %v25 = vld [vmem:[%s2] sm:$0xff]
  %v26 = vld [vmem:[%s2 + $0x8] sm:$0xff]
  %v27 = vld [vmem:[%s2 + $0x10] sm:$0xff]
  %v28 = vld [vmem:[%s2 + $0x18] sm:$0xff]
  %v29 = vld [vmem:[%s2 + $0x20] sm:$0xff]
  %v30 = vld [vmem:[%s2 + $0x28] sm:$0xff]
  %v31 = vld [vmem:[%s2 + $0x30] sm:$0xff]
  %v32 = vld [vmem:[%s2 + $0x38] sm:$0xff]
  %vm33 = vcmask 261120
  %v35 = vsel %vm33, %v24, 0
  %37 = vmatprep.subr.mxu0 0.0
  %38 = vmatpush1.msra.mxu0 %v29
  %39 = vmatprep.subr.mxu0 0.0
  %40 = vmatpush1.msra.mxu0 %v30
  %41 = vmatprep.subr.mxu0 0.0
  %42 = vmatpush1.msra.mxu0 %v31
  %43 = vmatprep.subr.mxu0 0.0
  %44 = vmatpush1.msra.mxu0 %v32
  %45 = vmatprep.subr.mxu0 0.0
  %46 = vmatpush1.msra.mxu0 0.0
  %47 = vmatprep.subr.mxu0 0.0
  %48 = vmatpush1.msra.mxu0 0.0
  %49 = vmatprep.subr.mxu0 0.0
  %50 = vmatpush1.msra.mxu0 0.0
  %51 = vmatprep.subr.mxu0 0.0
  %52 = vmatpush1.msra.mxu0 0.0
  %53 = vmatprep.subr.mxu0 0.0
  %54 = vmatpush1.msra.mxu0 0.0
  %55 = vmatprep.subr.mxu0 0.0
  %56 = vmatpush1.msra.mxu0 0.0
  %57 = vmatprep.subr.mxu0 0.0
  %58 = vmatpush1.msra.mxu0 0.0
  %59 = vmatprep.subr.mxu0 0.0
  %60 = vmatpush1.msra.mxu0 0.0
  %61 = vmatprep.subr.mxu0 0.0
  %62 = vmatpush1.msra.mxu0 0.0
  %63 = vmatprep.subr.mxu0 0.0
  %64 = vmatpush1.msra.mxu0 0.0
  %65 = vmatprep.subr.mxu0 0.0
  %66 = vmatpush1.msra.mxu0 0.0
  %67 = vmatprep.subr.mxu0 0.0
  %68 = vmatpush1.msra.mxu0 0.0
  %69 = vmatprep.subr.mxu0 0.0
  %70 = vmatpush1.msra.mxu0 0.0
  %71 = vmatprep.subr.mxu0 0.0
  %72 = vmatpush1.msra.mxu0 0.0
  %73 = vmatprep.subr.mxu0 0.0
  %74 = vmatpush1.msra.mxu0 0.0
  %75 = vmatprep.subr.mxu0 0.0
  %76 = vmatpush1.msra.mxu0 0.0
  %77 = vmatprep.subr.mxu0 0.0
  %78 = vmatpush1.msra.mxu0 0.0
  %79 = vmatprep.subr.mxu0 0.0
  %80 = vmatpush1.msra.mxu0 0.0
  %81 = vmatprep.subr.mxu0 0.0
  %82 = vmatpush1.msra.mxu0 0.0
  %83 = vmatprep.subr.mxu0 0.0
  %84 = vmatpush1.msra.mxu0 0.0
  %85 = vmatprep.subr.mxu0 0.0
  %86 = vmatpush1.msra.mxu0 0.0
  %87 = vmatprep.subr.mxu0 0.0
  %88 = vmatpush1.msra.mxu0 0.0
  %89 = vmatprep.subr.mxu0 0.0
  %90 = vmatpush1.msra.mxu0 0.0
  %91 = vmatprep.subr.mxu0 0.0
  %92 = vmatpush1.msra.mxu0 0.0
  %93 = vmatprep.subr.mxu0 0.0
  %94 = vmatpush1.msra.mxu0 0.0
  %95 = vmatprep.subr.mxu0 0.0
  %96 = vmatpush1.msra.mxu0 0.0
  %97 = vmatprep.subr.mxu0 0.0
  %98 = vmatpush1.msra.mxu0 0.0
  %99 = vmatprep.subr.mxu0 0.0
  %100 = vmatpush1.msra.mxu0 0.0
  %101 = vmatprep.mubr.f32.mxu0 0.0
  %102 = vmatmul.mubr.f32.gmra.mrb[0].mxu0 %v35
  %v103 = vpop.f32.mrb[0].mxu0
  %v104 = vadd.f32 0.0, %v103
  %v105 = vpop.f32.mrb[0].mxu0
  %106 = vdwg.mxu0
  %v108 = vsel %vm33, %v23, 0
  %110 = vmatprep.subr.mxu0 0.0
  %111 = vmatpush1.msra.mxu0 %v25
  %112 = vmatprep.subr.mxu0 0.0
  %113 = vmatpush1.msra.mxu0 %v26
  %114 = vmatprep.subr.mxu0 0.0
  %115 = vmatpush1.msra.mxu0 %v27
  %116 = vmatprep.subr.mxu0 0.0
  %117 = vmatpush1.msra.mxu0 %v28
  %118 = vmatprep.subr.mxu0 0.0
  %119 = vmatpush1.msra.mxu0 0.0
  %120 = vmatprep.subr.mxu0 0.0
  %121 = vmatpush1.msra.mxu0 0.0
  %122 = vmatprep.subr.mxu0 0.0
  %123 = vmatpush1.msra.mxu0 0.0
  %124 = vmatprep.subr.mxu0 0.0
  %125 = vmatpush1.msra.mxu0 0.0
  %126 = vmatprep.subr.mxu0 0.0
  %127 = vmatpush1.msra.mxu0 0.0
  %128 = vmatprep.subr.mxu0 0.0
  %129 = vmatpush1.msra.mxu0 0.0
  %130 = vmatprep.subr.mxu0 0.0
  %131 = vmatpush1.msra.mxu0 0.0
  %132 = vmatprep.subr.mxu0 0.0
  %133 = vmatpush1.msra.mxu0 0.0
  %134 = vmatprep.subr.mxu0 0.0
  %135 = vmatpush1.msra.mxu0 0.0
  %136 = vmatprep.subr.mxu0 0.0
  %137 = vmatpush1.msra.mxu0 0.0
  %138 = vmatprep.subr.mxu0 0.0
  %139 = vmatpush1.msra.mxu0 0.0
  %140 = vmatprep.subr.mxu0 0.0
  %141 = vmatpush1.msra.mxu0 0.0
  %142 = vmatprep.subr.mxu0 0.0
  %143 = vmatpush1.msra.mxu0 0.0
  %144 = vmatprep.subr.mxu0 0.0
  %145 = vmatpush1.msra.mxu0 0.0
  %146 = vmatprep.subr.mxu0 0.0
  %147 = vmatpush1.msra.mxu0 0.0
  %148 = vmatprep.subr.mxu0 0.0
  %149 = vmatpush1.msra.mxu0 0.0
  %150 = vmatprep.subr.mxu0 0.0
  %151 = vmatpush1.msra.mxu0 0.0
  %152 = vmatprep.subr.mxu0 0.0
  %153 = vmatpush1.msra.mxu0 0.0
  %154 = vmatprep.subr.mxu0 0.0
  %155 = vmatpush1.msra.mxu0 0.0
  %156 = vmatprep.subr.mxu0 0.0
  %157 = vmatpush1.msra.mxu0 0.0
  %158 = vmatprep.subr.mxu0 0.0
  %159 = vmatpush1.msra.mxu0 0.0
  %160 = vmatprep.subr.mxu0 0.0
  %161 = vmatpush1.msra.mxu0 0.0
  %162 = vmatprep.subr.mxu0 0.0
  %163 = vmatpush1.msra.mxu0 0.0
  %164 = vmatprep.subr.mxu0 0.0
  %165 = vmatpush1.msra.mxu0 0.0
  %166 = vmatprep.subr.mxu0 0.0
  %167 = vmatpush1.msra.mxu0 0.0
  %168 = vmatprep.subr.mxu0 0.0
  %169 = vmatpush1.msra.mxu0 0.0
  %170 = vmatprep.subr.mxu0 0.0
  %171 = vmatpush1.msra.mxu0 0.0
  %172 = vmatprep.subr.mxu0 0.0
  %173 = vmatpush1.msra.mxu0 0.0
  %174 = vmatprep.mubr.f32.mxu0 0.0
  %175 = vmatmul.mubr.f32.gmra.mrb[0].mxu0 %v108
  %v176 = vpop.f32.mrb[0].mxu0
  %v177 = vadd.f32 %v104, %v176
  %v178 = vpop.f32.mrb[0].mxu0
  %179 = vdwg.mxu0
  %v180 = vsub.f32 %v23, %v24
  %v181 = vld [vmem:[%s2 + $0x40] sm:$0xff]
  %v182 = vld [vmem:[%s2 + $0x48] sm:$0xff]
  %v183 = vld [vmem:[%s2 + $0x50] sm:$0xff]
  %v184 = vld [vmem:[%s2 + $0x58] sm:$0xff]
  %v186 = vsel %vm33, %v180, 0
  %188 = vmatprep.subr.mxu0 0.0
  %189 = vmatpush1.msra.mxu0 %v181
  %190 = vmatprep.subr.mxu0 0.0
  %191 = vmatpush1.msra.mxu0 %v182
  %192 = vmatprep.subr.mxu0 0.0
  %193 = vmatpush1.msra.mxu0 %v183
  %194 = vmatprep.subr.mxu0 0.0
  %195 = vmatpush1.msra.mxu0 %v184
  %196 = vmatprep.subr.mxu0 0.0
  %197 = vmatpush1.msra.mxu0 0.0
  %198 = vmatprep.subr.mxu0 0.0
  %199 = vmatpush1.msra.mxu0 0.0
  %200 = vmatprep.subr.mxu0 0.0
  %201 = vmatpush1.msra.mxu0 0.0
  %202 = vmatprep.subr.mxu0 0.0
  %203 = vmatpush1.msra.mxu0 0.0
  %204 = vmatprep.subr.mxu0 0.0
  %205 = vmatpush1.msra.mxu0 0.0
  %206 = vmatprep.subr.mxu0 0.0
  %207 = vmatpush1.msra.mxu0 0.0
  %208 = vmatprep.subr.mxu0 0.0
  %209 = vmatpush1.msra.mxu0 0.0
  %210 = vmatprep.subr.mxu0 0.0
  %211 = vmatpush1.msra.mxu0 0.0
  %212 = vmatprep.subr.mxu0 0.0
  %213 = vmatpush1.msra.mxu0 0.0
  %214 = vmatprep.subr.mxu0 0.0
  %215 = vmatpush1.msra.mxu0 0.0
  %216 = vmatprep.subr.mxu0 0.0
  %217 = vmatpush1.msra.mxu0 0.0
  %218 = vmatprep.subr.mxu0 0.0
  %219 = vmatpush1.msra.mxu0 0.0
  %220 = vmatprep.subr.mxu0 0.0
  %221 = vmatpush1.msra.mxu0 0.0
  %222 = vmatprep.subr.mxu0 0.0
  %223 = vmatpush1.msra.mxu0 0.0
  %224 = vmatprep.subr.mxu0 0.0
  %225 = vmatpush1.msra.mxu0 0.0
  %226 = vmatprep.subr.mxu0 0.0
  %227 = vmatpush1.msra.mxu0 0.0
  %228 = vmatprep.subr.mxu0 0.0
  %229 = vmatpush1.msra.mxu0 0.0
  %230 = vmatprep.subr.mxu0 0.0
  %231 = vmatpush1.msra.mxu0 0.0
  %232 = vmatprep.subr.mxu0 0.0
  %233 = vmatpush1.msra.mxu0 0.0
  %234 = vmatprep.subr.mxu0 0.0
  %235 = vmatpush1.msra.mxu0 0.0
  %236 = vmatprep.subr.mxu0 0.0
  %237 = vmatpush1.msra.mxu0 0.0
  %238 = vmatprep.subr.mxu0 0.0
  %239 = vmatpush1.msra.mxu0 0.0
  %240 = vmatprep.subr.mxu0 0.0
  %241 = vmatpush1.msra.mxu0 0.0
  %242 = vmatprep.subr.mxu0 0.0
  %243 = vmatpush1.msra.mxu0 0.0
  %244 = vmatprep.subr.mxu0 0.0
  %245 = vmatpush1.msra.mxu0 0.0
  %246 = vmatprep.subr.mxu0 0.0
  %247 = vmatpush1.msra.mxu0 0.0
  %248 = vmatprep.subr.mxu0 0.0
  %249 = vmatpush1.msra.mxu0 0.0
  %250 = vmatprep.subr.mxu0 0.0
  %251 = vmatpush1.msra.mxu0 0.0
  %252 = vmatprep.mubr.f32.mxu0 0.0
  %253 = vmatmul.mubr.f32.gmra.mrb[0].mxu0 %v186
  %v254 = vpop.f32.mrb[0].mxu0
  %v255 = vadd.f32 0.0, %v254
  %v256 = vpop.f32.mrb[0].mxu0
  %257 = vdwg.mxu0
  %v258 = vadd.f32 %v177, %v255
  %v259 = vmul.f32 %v23, %v24
  %v260 = vld [vmem:[%s2 + $0x60] sm:$0xff]
  %v261 = vld [vmem:[%s2 + $0x68] sm:$0xff]
  %v262 = vld [vmem:[%s2 + $0x70] sm:$0xff]
  %v263 = vld [vmem:[%s2 + $0x78] sm:$0xff]
  %v265 = vsel %vm33, %v259, 0
  %267 = vmatprep.subr.mxu0 0.0
  %268 = vmatpush1.msra.mxu0 %v260
  %269 = vmatprep.subr.mxu0 0.0
  %270 = vmatpush1.msra.mxu0 %v261
  %271 = vmatprep.subr.mxu0 0.0
  %272 = vmatpush1.msra.mxu0 %v262
  %273 = vmatprep.subr.mxu0 0.0
  %274 = vmatpush1.msra.mxu0 %v263
  %275 = vmatprep.subr.mxu0 0.0
  %276 = vmatpush1.msra.mxu0 0.0
  %277 = vmatprep.subr.mxu0 0.0
  %278 = vmatpush1.msra.mxu0 0.0
  %279 = vmatprep.subr.mxu0 0.0
  %280 = vmatpush1.msra.mxu0 0.0
  %281 = vmatprep.subr.mxu0 0.0
  %282 = vmatpush1.msra.mxu0 0.0
  %283 = vmatprep.subr.mxu0 0.0
  %284 = vmatpush1.msra.mxu0 0.0
  %285 = vmatprep.subr.mxu0 0.0
  %286 = vmatpush1.msra.mxu0 0.0
  %287 = vmatprep.subr.mxu0 0.0
  %288 = vmatpush1.msra.mxu0 0.0
  %289 = vmatprep.subr.mxu0 0.0
  %290 = vmatpush1.msra.mxu0 0.0
  %291 = vmatprep.subr.mxu0 0.0
  %292 = vmatpush1.msra.mxu0 0.0
  %293 = vmatprep.subr.mxu0 0.0
  %294 = vmatpush1.msra.mxu0 0.0
  %295 = vmatprep.subr.mxu0 0.0
  %296 = vmatpush1.msra.mxu0 0.0
  %297 = vmatprep.subr.mxu0 0.0
  %298 = vmatpush1.msra.mxu0 0.0
  %299 = vmatprep.subr.mxu0 0.0
  %300 = vmatpush1.msra.mxu0 0.0
  %301 = vmatprep.subr.mxu0 0.0
  %302 = vmatpush1.msra.mxu0 0.0
  %303 = vmatprep.subr.mxu0 0.0
  %304 = vmatpush1.msra.mxu0 0.0
  %305 = vmatprep.subr.mxu0 0.0
  %306 = vmatpush1.msra.mxu0 0.0
  %307 = vmatprep.subr.mxu0 0.0
  %308 = vmatpush1.msra.mxu0 0.0
  %309 = vmatprep.subr.mxu0 0.0
  %310 = vmatpush1.msra.mxu0 0.0
  %311 = vmatprep.subr.mxu0 0.0
  %312 = vmatpush1.msra.mxu0 0.0
  %313 = vmatprep.subr.mxu0 0.0
  %314 = vmatpush1.msra.mxu0 0.0
  %315 = vmatprep.subr.mxu0 0.0
  %316 = vmatpush1.msra.mxu0 0.0
  %317 = vmatprep.subr.mxu0 0.0
  %318 = vmatpush1.msra.mxu0 0.0
  %319 = vmatprep.subr.mxu0 0.0
  %320 = vmatpush1.msra.mxu0 0.0
  %321 = vmatprep.subr.mxu0 0.0
  %322 = vmatpush1.msra.mxu0 0.0
  %323 = vmatprep.subr.mxu0 0.0
  %324 = vmatpush1.msra.mxu0 0.0
  %325 = vmatprep.subr.mxu0 0.0
  %326 = vmatpush1.msra.mxu0 0.0
  %327 = vmatprep.subr.mxu0 0.0
  %328 = vmatpush1.msra.mxu0 0.0
  %329 = vmatprep.subr.mxu0 0.0
  %330 = vmatpush1.msra.mxu0 0.0
  %331 = vmatprep.mubr.f32.mxu0 0.0
  %332 = vmatmul.mubr.f32.gmra.mrb[0].mxu0 %v265
  %v333 = vpop.f32.mrb[0].mxu0
  %v334 = vadd.f32 0.0, %v333
  %v335 = vpop.f32.mrb[0].mxu0
  %336 = vdwg.mxu0
  %v337 = vadd.f32 %v258, %v334
  %v338 = vld [vmem:[%s3] sm:$0x1]
  %v340 = vlaneseq
  %v341 = vshrl.u32 %v340, 7
  %v342 = vsub.s32 0, %v341
  %v343 = vrot.slane %v338, %v342
  %v345 = vadd.f32 %v337, %v343
  %v346 = vmul.f32 %v345, 0.5
  %v347 = vmul.f32 %v345, 0.7978846
  %v348 = vmul.f32 %v345, 0.044715
  %v349 = vmul.f32 %v348, %v345
  %v350 = vadd.f32 %v349, 1.0
  %v351 = vmul.f32 %v347, %v350
  %v352 = vtanh.pop %v351
  %v353 = vadd.f32 %v352, 1.0
  %v354 = vmul.f32 %v346, %v353
  %v355 = vld [vmem:[%s4] sm:$0xff]
  %v356 = vld [vmem:[%s4 + $0x8] sm:$0xff]
  %v357 = vld [vmem:[%s4 + $0x10] sm:$0xff]
  %v358 = vld [vmem:[%s4 + $0x18] sm:$0xff]
  %v359 = vld [vmem:[%s5] sm:$0x1]
  %v361 = vlaneseq
  %v362 = vshrl.u32 %v361, 7
  %v363 = vsub.s32 0, %v362
  %v364 = vrot.slane %v359, %v363
  %v367 = vsel %vm33, %v354, 0
  %369 = vmatprep.subr.mxu0 0.0
  %370 = vmatpush1.msra.mxu0 %v355
  %371 = vmatprep.subr.mxu0 0.0
  %372 = vmatpush1.msra.mxu0 %v356
  %373 = vmatprep.subr.mxu0 0.0
  %374 = vmatpush1.msra.mxu0 %v357
  %375 = vmatprep.subr.mxu0 0.0
  %376 = vmatpush1.msra.mxu0 %v358
  %377 = vmatprep.subr.mxu0 0.0
  %378 = vmatpush1.msra.mxu0 0.0
  %379 = vmatprep.subr.mxu0 0.0
  %380 = vmatpush1.msra.mxu0 0.0
  %381 = vmatprep.subr.mxu0 0.0
  %382 = vmatpush1.msra.mxu0 0.0
  %383 = vmatprep.subr.mxu0 0.0
  %384 = vmatpush1.msra.mxu0 0.0
  %385 = vmatprep.subr.mxu0 0.0
  %386 = vmatpush1.msra.mxu0 0.0
  %387 = vmatprep.subr.mxu0 0.0
  %388 = vmatpush1.msra.mxu0 0.0
  %389 = vmatprep.subr.mxu0 0.0
  %390 = vmatpush1.msra.mxu0 0.0
  %391 = vmatprep.subr.mxu0 0.0
  %392 = vmatpush1.msra.mxu0 0.0
  %393 = vmatprep.subr.mxu0 0.0
  %394 = vmatpush1.msra.mxu0 0.0
  %395 = vmatprep.subr.mxu0 0.0
  %396 = vmatpush1.msra.mxu0 0.0
  %397 = vmatprep.subr.mxu0 0.0
  %398 = vmatpush1.msra.mxu0 0.0
  %399 = vmatprep.subr.mxu0 0.0
  %400 = vmatpush1.msra.mxu0 0.0
  %401 = vmatprep.subr.mxu0 0.0
  %402 = vmatpush1.msra.mxu0 0.0
  %403 = vmatprep.subr.mxu0 0.0
  %404 = vmatpush1.msra.mxu0 0.0
  %405 = vmatprep.subr.mxu0 0.0
  %406 = vmatpush1.msra.mxu0 0.0
  %407 = vmatprep.subr.mxu0 0.0
  %408 = vmatpush1.msra.mxu0 0.0
  %409 = vmatprep.subr.mxu0 0.0
  %410 = vmatpush1.msra.mxu0 0.0
  %411 = vmatprep.subr.mxu0 0.0
  %412 = vmatpush1.msra.mxu0 0.0
  %413 = vmatprep.subr.mxu0 0.0
  %414 = vmatpush1.msra.mxu0 0.0
  %415 = vmatprep.subr.mxu0 0.0
  %416 = vmatpush1.msra.mxu0 0.0
  %417 = vmatprep.subr.mxu0 0.0
  %418 = vmatpush1.msra.mxu0 0.0
  %419 = vmatprep.subr.mxu0 0.0
  %420 = vmatpush1.msra.mxu0 0.0
  %421 = vmatprep.subr.mxu0 0.0
  %422 = vmatpush1.msra.mxu0 0.0
  %423 = vmatprep.subr.mxu0 0.0
  %424 = vmatpush1.msra.mxu0 0.0
  %425 = vmatprep.subr.mxu0 0.0
  %426 = vmatpush1.msra.mxu0 0.0
  %427 = vmatprep.subr.mxu0 0.0
  %428 = vmatpush1.msra.mxu0 0.0
  %429 = vmatprep.subr.mxu0 0.0
  %430 = vmatpush1.msra.mxu0 0.0
  %431 = vmatprep.subr.mxu0 0.0
  %432 = vmatpush1.msra.mxu0 0.0
  %433 = vmatprep.mubr.f32.mxu0 0.0
  %434 = vmatmul.mubr.f32.gmra.mrb[0].mxu0 %v367
  %v435 = vpop.f32.mrb[0].mxu0
  %v436 = vadd.f32 %v364, %v435
  %v437 = vpop.f32.mrb[0].mxu0
  %438 = vdwg.mxu0
  %439 = vst [vmem:[%s6] sm:$0xff] %v436
  // Predicated region
  $region26: #{prediction_forward.1} parent=0 // pred_check
    _
  $region27: #{prediction_forward.1} parent=0 // pred_check_branch
    %441 = sbr.rel (0) target = $region29
  $region28: #{prediction_forward.1} parent=0 // pred_region
    _
  $region29: #{prediction_forward.1} parent=0 // pred_fallthru
    _
  // Predicated region
  $region30: #{prediction_forward.1} parent=0 // pred_check
    _
  $region31: #{prediction_forward.1} parent=0 // pred_check_branch
    %443 = sbr.rel (0) target = $region33
  $region32: #{prediction_forward.1} parent=0 // pred_region
    _
  $region33: #{prediction_forward.1} parent=0 // pred_fallthru
    _

</llo_original>
